<compile_context>
chip_gen: v6e
topology: v6e:2x2x1
jax: 0.10.0
libtpu: 0.0.40
codegen_flags: <defaults>
</compile_context>

<pallas_src>
import functools
import math

import jax
import jax.numpy as jnp
from jax.experimental import pallas as pl
from jax.experimental.pallas import tpu as pltpu


# ----------------------------------------------------------------------------
# Plain-JAX glue: sampling / grouping (data-dependent gathers, no hot compute).
# ----------------------------------------------------------------------------
def square_distance(src, dst):
    # src [B,N,C], dst [B,M,C] -> [B,N,M]
    dist = -2.0 * jnp.einsum("bnc,bmc->bnm", src, dst)
    dist = dist + jnp.sum(src ** 2, axis=-1)[:, :, None]
    dist = dist + jnp.sum(dst ** 2, axis=-1)[:, None, :]
    return dist


def index_points(points, idx):
    # points [B,N,C], idx [B,...] -> [B,...,C]
    return jax.vmap(lambda p, i: p[i])(points, idx)


def farthest_point_sample(xyz, npoint):
    # xyz [B,N,3] -> indices [B,npoint]
    # TODO(synk): torch.randint seeds the first centroid randomly; we use a
    # deterministic start index 0 for reproducibility.
    B, N, _ = xyz.shape
    distance = jnp.full((B, N), 1e10, dtype=jnp.float32)
    farthest = jnp.zeros((B,), dtype=jnp.int32)
    centroids = jnp.zeros((B, npoint), dtype=jnp.int32)

    def body(i, carry):
        centroids, distance, farthest = carry
        centroids = centroids.at[:, i].set(farthest)
        centroid = jnp.take_along_axis(xyz, farthest[:, None, None], axis=1)  # [B,1,3]
        dist = jnp.sum((xyz - centroid) ** 2, axis=-1)
        distance = jnp.minimum(distance, dist)
        farthest = jnp.argmax(distance, axis=-1).astype(jnp.int32)
        return centroids, distance, farthest

    centroids, _, _ = jax.lax.fori_loop(0, npoint, body, (centroids, distance, farthest))
    return centroids


def query_ball_point(radius, nsample, xyz, new_xyz):
    # xyz [B,N,3], new_xyz [B,S,3] -> [B,S,nsample] int32
    B, N, _ = xyz.shape
    S = new_xyz.shape[1]
    sqrdists = square_distance(new_xyz, xyz)                       # [B,S,N]
    group_idx = jnp.broadcast_to(jnp.arange(N, dtype=jnp.int32), (B, S, N))
    group_idx = jnp.where(sqrdists > radius ** 2, jnp.int32(N), group_idx)
    group_idx = jnp.sort(group_idx, axis=-1)[:, :, :nsample]
    group_first = jnp.broadcast_to(group_idx[:, :, :1], group_idx.shape)
    group_idx = jnp.where(group_idx == N, group_first, group_idx)
    return group_idx


def sample_and_group(npoint, radius, nsample, xyz, points):
    B, N, C = xyz.shape
    S = npoint
    fps_idx = farthest_point_sample(xyz, npoint)                   # [B,S]
    new_xyz = index_points(xyz, fps_idx)                           # [B,S,3]
    idx = query_ball_point(radius, nsample, xyz, new_xyz)          # [B,S,K]
    grouped_xyz = index_points(xyz, idx)                           # [B,S,K,3]
    grouped_xyz_norm = grouped_xyz - new_xyz.reshape(B, S, 1, C)
    if points is not None:
        grouped_points = index_points(points, idx)                 # [B,S,K,D]
        new_points = jnp.concatenate([grouped_xyz_norm, grouped_points], axis=-1)
    else:
        new_points = grouped_xyz_norm
    return new_xyz, new_points


def sample_and_group_all(xyz, points):
    B, N, C = xyz.shape
    new_xyz = jnp.zeros((B, 1, C), dtype=xyz.dtype)
    grouped_xyz = xyz.reshape(B, 1, N, C)
    if points is not None:
        new_points = jnp.concatenate([grouped_xyz, points.reshape(B, 1, N, -1)], axis=-1)
    else:
        new_points = grouped_xyz
    return new_xyz, new_points


# ----------------------------------------------------------------------------
# Pallas kernels
# ----------------------------------------------------------------------------
_LANE = 128                     # lane width: output-channel padding target
_SUB = 8                        # sublane width: contraction-dim padding target
_VMEM_LIMIT_BYTES = 48 * 1024 * 1024   # safe on v5e/v6e (128 MiB) and v7x (64 MiB)


def _round_up(x, m):
    return ((x + m - 1) // m) * m


def make_layer_kernel(apply_act, rows_valid, tile_rows):
    """(prev-layer BN+ReLU) -> 1x1-conv matmul -> per-tile channel sum/sumsq.

    apply_act   : False for the first layer (raw grouped features in).
    rows_valid  : number of real (unpadded) rows; padded rows are excluded
                  from the batch statistics so they stay exact.
    """
    need_mask = (rows_valid % tile_rows) != 0

    def kernel(x_ref, scale_ref, shift_ref, w_ref, y_ref, s_ref, ss_ref):
        x = x_ref[...]                                    # [TM, Cin]
        if apply_act:
            # Previous layer's train-mode BN folded to per-channel affine (f32).
            x = jnp.maximum(x * scale_ref[...] + shift_ref[...], 0.0)
        # 1x1 conv == matmul over channels; bf16 operands feed the MXU,
        # f32 accumulation.  (conv bias dropped: cancelled by BN mean-sub.)
        y = jnp.dot(x.astype(w_ref.dtype), w_ref[...],
                    preferred_element_type=jnp.float32)   # [TM, Cout] f32
        y_ref[...] = y

        if need_mask:  # exclude zero-padded group rows from the statistics
            row0 = pl.program_id(0) * tile_rows
            rid = row0 + jax.lax.broadcasted_iota(jnp.int32, y.shape, 0)
            y = jnp.where(rid < rows_valid, y, 0.0)
        # Per-tile partial sums; finalized (mean, E[y^2]-mean^2) outside.
        s_ref[...] = jnp.sum(y, axis=0, keepdims=True)[None]        # [1,1,Cout]
        ss_ref[...] = jnp.sum(y * y, axis=0, keepdims=True)[None]   # [1,1,Cout]

    return kernel


def bn_relu_max_kernel(y_ref, scale_ref, shift_ref, o_ref):
    # Last layer's BN+ReLU, then torch.max over nsample (dim K).
    h = jnp.maximum(y_ref[...] * scale_ref[...] + shift_ref[...], 0.0)  # [TG,K,C]
    # NOTE: K is small (<=64); the single sublane/XLU reduce is cheap next to
    # the matmuls.  Output last dim is 128-padded -> unmasked lane-dense vst.
    o_ref[...] = jnp.max(h, axis=1)                                     # [TG, C]


def sa_mlp_max(grouped, params, *, tile_g=64):
    """grouped [B,S,K,C0] -> [B,S,C_last] via conv1x1+BN(train)+ReLU stack + max over K.

    tile_g: groups per grid step (rows per step = tile_g*K).  Default 64 fits
    the 64 MiB VMEM of v7x with headroom; can be raised on v5e/v6e (128 MiB).
    """
    B, S, K, C0 = grouped.shape
    G = B * S
    tile_g = min(tile_g, _round_up(G, _SUB))
    Gp = _round_up(G, tile_g)
    TM = tile_g * K                       # row-tile of flattened activations
    R, Rp = G * K, Gp * K

    # Layer-0 input: bf16 (halves HBM traffic; it is cast to bf16 for the MXU
    # anyway), contraction dim padded to a sublane multiple.
    C0p = _round_up(C0, _SUB)
    x = jnp.zeros((Rp, C0p), jnp.bfloat16)
    x = x.at[:R, :C0].set(grouped.astype(jnp.bfloat16).reshape(R, C0))

    m = jnp.float32(R)                    # real row count for batch statistics
    scale = jnp.ones((1, C0p), jnp.float32)    # dummies: layer 0 has no BN in front
    shift = jnp.zeros((1, C0p), jnp.float32)
    cur, cin_p = x, C0p

    for i, (w, gamma, beta) in enumerate(params):
        cin, cout = w.shape
        cout_p = _round_up(cout, _LANE)   # lane-dense output channels
        w_p = jnp.zeros((cin_p, cout_p), jnp.bfloat16).at[:cin, :cout].set(
            w.astype(jnp.bfloat16))
        gamma_p = jnp.zeros((1, cout_p), jnp.float32).at[:, :cout].set(gamma)
        beta_p = jnp.zeros((1, cout_p), jnp.float32).at[:, :cout].set(beta)

        nt = Rp // TM
        y, s, ss = pl.pallas_call(
            make_layer_kernel(apply_act=(i > 0), rows_valid=R, tile_rows=TM),
            grid=(nt,),
            in_specs=[
                pl.BlockSpec((TM, cin_p), lambda g: (g, 0)),      # activations: streamed
                pl.BlockSpec((1, cin_p), lambda g: (0, 0)),       # scale: VMEM-resident
                pl.BlockSpec((1, cin_p), lambda g: (0, 0)),       # shift: VMEM-resident
                pl.BlockSpec((cin_p, cout_p), lambda g: (0, 0)),  # weights: VMEM-resident
            ],
            out_specs=[
                pl.BlockSpec((TM, cout_p), lambda g: (g, 0)),
                pl.BlockSpec((1, 1, cout_p), lambda g: (g, 0, 0)),
                pl.BlockSpec((1, 1, cout_p), lambda g: (g, 0, 0)),
            ],
            out_shape=[
                jax.ShapeDtypeStruct((Rp, cout_p), jnp.float32),   # pre-BN activations
                jax.ShapeDtypeStruct((nt, 1, cout_p), jnp.float32),
                jax.ShapeDtypeStruct((nt, 1, cout_p), jnp.float32),
            ],
            compiler_params=pltpu.CompilerParams(
                dimension_semantics=("parallel",),
                vmem_limit_bytes=_VMEM_LIMIT_BYTES),
        )(cur, scale, shift, w_p)

        # Finish the exact whole-batch train-mode BN statistics (biased var,
        # single pass: var = E[y^2] - mean^2) and fold gamma/beta into the
        # per-channel affine consumed by the next kernel.
        mean = jnp.sum(s, axis=0) / m                              # [1, cout_p]
        var = jnp.maximum(jnp.sum(ss, axis=0) / m - mean * mean, 0.0)
        inv = jax.lax.rsqrt(var + 1e-5)
        scale = gamma_p * inv
        shift = beta_p - mean * scale
        cur, cin_p = y, cout_p

    c_last = params[-1][0].shape[1]
    y3 = cur.reshape(Gp, K, cin_p)        # row-major metadata reshape (free in XLA)
    out = pl.pallas_call(
        bn_relu_max_kernel,
        grid=(Gp // tile_g,),
        in_specs=[
            pl.BlockSpec((tile_g, K, cin_p), lambda g: (g, 0, 0)),
            pl.BlockSpec((1, cin_p), lambda g: (0, 0)),
            pl.BlockSpec((1, cin_p), lambda g: (0, 0)),
        ],
        out_specs=pl.BlockSpec((tile_g, cin_p), lambda g: (g, 0)),
        out_shape=jax.ShapeDtypeStruct((Gp, cin_p), jnp.float32),
        compiler_params=pltpu.CompilerParams(
            dimension_semantics=("parallel",),
            vmem_limit_bytes=_VMEM_LIMIT_BYTES),
    )(y3, scale, shift)
    return out[:G, :c_last].reshape(B, S, c_last)


# ----------------------------------------------------------------------------
# Module-equivalent forward
# ----------------------------------------------------------------------------
def init_sa_params(key, in_channel, mlp):
    # Conv2d(k=1) weight ~ U(-1/sqrt(fan_in), 1/sqrt(fan_in)); the conv bias is
    # omitted because the training-mode BN mean subtraction cancels it exactly.
    params = []
    last = in_channel
    for out_c in mlp:
        key, kw = jax.random.split(key)
        bound = 1.0 / math.sqrt(last)
        w = jax.random.uniform(kw, (last, out_c), jnp.float32, -bound, bound)
        gamma = jnp.ones((1, out_c), jnp.float32)   # BN default init
        beta = jnp.zeros((1, out_c), jnp.float32)
        params.append((w, gamma, beta))
        last = out_c
    return params


def pointnet_set_abstraction(xyz_bcn, points_bdn, params, npoint, radius,
                             nsample, group_all):
    """xyz_bcn: [B,3,N], points_bdn: [B,D,N] or None.
    Returns new_xyz [B,3,S], new_points [B,C_last,S]."""
    xyz = jnp.transpose(xyz_bcn, (0, 2, 1))                        # [B,N,3]
    points = (jnp.transpose(points_bdn, (0, 2, 1))
              if points_bdn is not None else None)                 # [B,N,D]
    if group_all:
        new_xyz, new_points = sample_and_group_all(xyz, points)
    else:
        new_xyz, new_points = sample_and_group(npoint, radius, nsample, xyz, points)
    feat = sa_mlp_max(new_points, params)                          # [B,S,C_last]
    return jnp.transpose(new_xyz, (0, 2, 1)), jnp.transpose(feat, (0, 2, 1))


if __name__ == "__main__":
    key = jax.random.PRNGKey(0)
    k_xyz, k_pts, k_par = jax.random.split(key, 3)

    # Small shapes consistent with the module's forward.
    B, N, D = 2, 32, 4
    npoint, radius, nsample = 8, 0.8, 8
    mlp = [16, 32, 64]
    in_channel = D + 3

    xyz = jax.random.normal(k_xyz, (B, 3, N), jnp.float32)         # [B, C=3, N]
    points = jax.random.normal(k_pts, (B, D, N), jnp.float32)      # [B, D, N]
    params = init_sa_params(k_par, in_channel, mlp)

    fwd = jax.jit(functools.partial(
        pointnet_set_abstraction, npoint=npoint, radius=radius,
        nsample=nsample, group_all=False))
    new_xyz, new_points = fwd(xyz, points, params)
    jax.block_until_ready((new_xyz, new_points))

    assert new_xyz.shape == (B, 3, npoint)
    assert new_points.shape == (B, mlp[-1], npoint)
    print("KERNEL_OK")
</pallas_src>

<mosaic_0001>
module attributes {stable_mosaic.version = 11 : i64} {
  func.func @kernel(%arg0: i32, %arg1: memref<128x8xbf16, #tpu.memory_space<vmem>>, %arg2: memref<1x8xf32, #tpu.memory_space<vmem>>, %arg3: memref<1x8xf32, #tpu.memory_space<vmem>>, %arg4: memref<8x128xbf16, #tpu.memory_space<vmem>>, %arg5: memref<128x128xf32, #tpu.memory_space<vmem>>, %arg6: memref<1x1x128xf32, #tpu.memory_space<vmem>>, %arg7: memref<1x1x128xf32, #tpu.memory_space<vmem>>) attributes {dimension_semantics = [#tpu.dimension_semantics<parallel>], iteration_bounds = array<i64: 1>, scalar_prefetch = 0 : i64, scratch_operands = 0 : i64, tpu.core_type = #tpu.core_type<tc>, window_params = [{transform_indices = @transform_0, window_bounds = array<i64: 128, 8>}, {pipeline_mode = #tpu.pipeline_mode<synchronous>, transform_indices = @transform_1, window_bounds = array<i64: 1, 8>}, {pipeline_mode = #tpu.pipeline_mode<synchronous>, transform_indices = @transform_2, window_bounds = array<i64: 1, 8>}, {pipeline_mode = #tpu.pipeline_mode<synchronous>, transform_indices = @transform_3, window_bounds = array<i64: 8, 128>}, {transform_indices = @transform_4, window_bounds = array<i64: 128, 128>}, {transform_indices = @transform_5, window_bounds = array<i64: 1, 1, 128>}, {transform_indices = @transform_6, window_bounds = array<i64: 1, 1, 128>}]} {
    %c0 = arith.constant 0 : index
    %c0_0 = arith.constant 0 : index
    %0 = vector.load %arg1[%c0, %c0_0] : memref<128x8xbf16, #tpu.memory_space<vmem>>, vector<128x8xbf16>
    %c0_1 = arith.constant 0 : index
    %c0_2 = arith.constant 0 : index
    %1 = vector.load %arg4[%c0_1, %c0_2] : memref<8x128xbf16, #tpu.memory_space<vmem>>, vector<8x128xbf16>
    %cst = arith.constant dense<0.000000e+00> : vector<128x128xf32>
    %2 = tpu.matmul %0, %1, %cst {dimension_numbers = #tpu.dot_dimension_numbers<[1], [0], [0], [1], [0, 0, 1, 1], [], []>} : vector<128x8xbf16>, vector<8x128xbf16>, vector<128x128xf32> -> vector<128x128xf32>
    %c0_3 = arith.constant 0 : index
    %c0_4 = arith.constant 0 : index
    %3 = vector.load %arg5[%c0_3, %c0_4] : memref<128x128xf32, #tpu.memory_space<vmem>>, vector<128x128xf32>
    tpu.vector_store %arg5[%c0_3, %c0_4], %2 {strides = array<i32>} : memref<128x128xf32, #tpu.memory_space<vmem>>, vector<128x128xf32>,
    %cst_5 = arith.constant dense<0.000000e+00> : vector<128xf32>
    %4 = vector.multi_reduction <add>, %2, %cst_5 [0] : vector<128x128xf32> to vector<128xf32>
    %5 = vector.shape_cast %4 : vector<128xf32> to vector<1x128xf32>
    %6 = vector.shape_cast %5 : vector<1x128xf32> to vector<1x1x128xf32>
    %c0_6 = arith.constant 0 : index
    %c0_7 = arith.constant 0 : index
    %c0_8 = arith.constant 0 : index
    %7 = vector.load %arg6[%c0_6, %c0_7, %c0_8] : memref<1x1x128xf32, #tpu.memory_space<vmem>>, vector<1x1x128xf32>
    tpu.vector_store %arg6[%c0_6, %c0_7, %c0_8], %6 {strides = array<i32>} : memref<1x1x128xf32, #tpu.memory_space<vmem>>, vector<1x1x128xf32>,
    %8 = arith.mulf %2, %2 : vector<128x128xf32>
    %cst_9 = arith.constant dense<0.000000e+00> : vector<128xf32>
    %9 = vector.multi_reduction <add>, %8, %cst_9 [0] : vector<128x128xf32> to vector<128xf32>
    %10 = vector.shape_cast %9 : vector<128xf32> to vector<1x128xf32>
    %11 = vector.shape_cast %10 : vector<1x128xf32> to vector<1x1x128xf32>
    %c0_10 = arith.constant 0 : index
    %c0_11 = arith.constant 0 : index
    %c0_12 = arith.constant 0 : index
    %12 = vector.load %arg7[%c0_10, %c0_11, %c0_12] : memref<1x1x128xf32, #tpu.memory_space<vmem>>, vector<1x1x128xf32>
    tpu.vector_store %arg7[%c0_10, %c0_11, %c0_12], %11 {strides = array<i32>} : memref<1x1x128xf32, #tpu.memory_space<vmem>>, vector<1x1x128xf32>,
    return
  }
  func.func @transform_0(%arg0: i32) -> (i32, i32) {
    %c0_i32 = arith.constant 0 : i32
    %c0_i32_0 = arith.constant 0 : i32
    return %arg0, %c0_i32 : i32, i32
  }
  func.func @transform_1(%arg0: i32) -> (i32, i32) {
    %c0_i32 = arith.constant 0 : i32
    %c0_i32_0 = arith.constant 0 : i32
    %c0_i32_1 = arith.constant 0 : i32
    return %c0_i32, %c0_i32_0 : i32, i32
  }
  func.func @transform_2(%arg0: i32) -> (i32, i32) {
    %c0_i32 = arith.constant 0 : i32
    %c0_i32_0 = arith.constant 0 : i32
    %c0_i32_1 = arith.constant 0 : i32
    return %c0_i32, %c0_i32_0 : i32, i32
  }
  func.func @transform_3(%arg0: i32) -> (i32, i32) {
    %c0_i32 = arith.constant 0 : i32
    %c0_i32_0 = arith.constant 0 : i32
    %c0_i32_1 = arith.constant 0 : i32
    return %c0_i32, %c0_i32_0 : i32, i32
  }
  func.func @transform_4(%arg0: i32) -> (i32, i32) {
    %c0_i32 = arith.constant 0 : i32
    %c0_i32_0 = arith.constant 0 : i32
    return %arg0, %c0_i32 : i32, i32
  }
  func.func @transform_5(%arg0: i32) -> (i32, i32, i32) {
    %c0_i32 = arith.constant 0 : i32
    %c0_i32_0 = arith.constant 0 : i32
    %c0_i32_1 = arith.constant 0 : i32
    return %arg0, %c0_i32, %c0_i32_0 : i32, i32, i32
  }
  func.func @transform_6(%arg0: i32) -> (i32, i32, i32) {
    %c0_i32 = arith.constant 0 : i32
    %c0_i32_0 = arith.constant 0 : i32
    %c0_i32_1 = arith.constant 0 : i32
    return %arg0, %c0_i32, %c0_i32_0 : i32, i32, i32
  }
}

module attributes {stable_mosaic.version = 11 : i64} {
  func.func @kernel(%arg0: i32, %arg1: memref<128x128xf32, #tpu.memory_space<vmem>>, %arg2: memref<1x128xf32, #tpu.memory_space<vmem>>, %arg3: memref<1x128xf32, #tpu.memory_space<vmem>>, %arg4: memref<128x128xbf16, #tpu.memory_space<vmem>>, %arg5: memref<128x128xf32, #tpu.memory_space<vmem>>, %arg6: memref<1x1x128xf32, #tpu.memory_space<vmem>>, %arg7: memref<1x1x128xf32, #tpu.memory_space<vmem>>) attributes {dimension_semantics = [#tpu.dimension_semantics<parallel>], iteration_bounds = array<i64: 1>, scalar_prefetch = 0 : i64, scratch_operands = 0 : i64, tpu.core_type = #tpu.core_type<tc>, window_params = [{transform_indices = @transform_0, window_bounds = array<i64: 128, 128>}, {pipeline_mode = #tpu.pipeline_mode<synchronous>, transform_indices = @transform_1, window_bounds = array<i64: 1, 128>}, {pipeline_mode = #tpu.pipeline_mode<synchronous>, transform_indices = @transform_2, window_bounds = array<i64: 1, 128>}, {pipeline_mode = #tpu.pipeline_mode<synchronous>, transform_indices = @transform_3, window_bounds = array<i64: 128, 128>}, {transform_indices = @transform_4, window_bounds = array<i64: 128, 128>}, {transform_indices = @transform_5, window_bounds = array<i64: 1, 1, 128>}, {transform_indices = @transform_6, window_bounds = array<i64: 1, 1, 128>}]} {
    %c0 = arith.constant 0 : index
    %c0_0 = arith.constant 0 : index
    %0 = vector.load %arg1[%c0, %c0_0] : memref<128x128xf32, #tpu.memory_space<vmem>>, vector<128x128xf32>
    %c0_1 = arith.constant 0 : index
    %c0_2 = arith.constant 0 : index
    %1 = vector.load %arg2[%c0_1, %c0_2] : memref<1x128xf32, #tpu.memory_space<vmem>>, vector<1x128xf32>
    %2 = vector.broadcast %1 : vector<1x128xf32> to vector<128x128xf32>
    %3 = arith.mulf %0, %2 : vector<128x128xf32>
    %c0_3 = arith.constant 0 : index
    %c0_4 = arith.constant 0 : index
    %4 = vector.load %arg3[%c0_3, %c0_4] : memref<1x128xf32, #tpu.memory_space<vmem>>, vector<1x128xf32>
    %5 = vector.broadcast %4 : vector<1x128xf32> to vector<128x128xf32>
    %6 = arith.addf %3, %5 : vector<128x128xf32>
    %cst = arith.constant 0.000000e+00 : f32
    %7 = vector.broadcast %cst : f32 to vector<128x128xf32>
    %8 = arith.maximumf %6, %7 : vector<128x128xf32>
    %9 = arith.truncf %8 : vector<128x128xf32> to vector<128x128xbf16>
    %c0_5 = arith.constant 0 : index
    %c0_6 = arith.constant 0 : index
    %10 = vector.load %arg4[%c0_5, %c0_6] : memref<128x128xbf16, #tpu.memory_space<vmem>>, vector<128x128xbf16>
    %cst_7 = arith.constant dense<0.000000e+00> : vector<128x128xf32>
    %11 = tpu.matmul %9, %10, %cst_7 {dimension_numbers = #tpu.dot_dimension_numbers<[1], [0], [0], [1], [0, 0, 1, 1], [], []>} : vector<128x128xbf16>, vector<128x128xbf16>, vector<128x128xf32> -> vector<128x128xf32>
    %c0_8 = arith.constant 0 : index
    %c0_9 = arith.constant 0 : index
    %12 = vector.load %arg5[%c0_8, %c0_9] : memref<128x128xf32, #tpu.memory_space<vmem>>, vector<128x128xf32>
    tpu.vector_store %arg5[%c0_8, %c0_9], %11 {strides = array<i32>} : memref<128x128xf32, #tpu.memory_space<vmem>>, vector<128x128xf32>,
    %cst_10 = arith.constant dense<0.000000e+00> : vector<128xf32>
    %13 = vector.multi_reduction <add>, %11, %cst_10 [0] : vector<128x128xf32> to vector<128xf32>
    %14 = vector.shape_cast %13 : vector<128xf32> to vector<1x128xf32>
    %15 = vector.shape_cast %14 : vector<1x128xf32> to vector<1x1x128xf32>
    %c0_11 = arith.constant 0 : index
    %c0_12 = arith.constant 0 : index
    %c0_13 = arith.constant 0 : index
    %16 = vector.load %arg6[%c0_11, %c0_12, %c0_13] : memref<1x1x128xf32, #tpu.memory_space<vmem>>, vector<1x1x128xf32>
    tpu.vector_store %arg6[%c0_11, %c0_12, %c0_13], %15 {strides = array<i32>} : memref<1x1x128xf32, #tpu.memory_space<vmem>>, vector<1x1x128xf32>,
    %17 = arith.mulf %11, %11 : vector<128x128xf32>
    %cst_14 = arith.constant dense<0.000000e+00> : vector<128xf32>
    %18 = vector.multi_reduction <add>, %17, %cst_14 [0] : vector<128x128xf32> to vector<128xf32>
    %19 = vector.shape_cast %18 : vector<128xf32> to vector<1x128xf32>
    %20 = vector.shape_cast %19 : vector<1x128xf32> to vector<1x1x128xf32>
    %c0_15 = arith.constant 0 : index
    %c0_16 = arith.constant 0 : index
    %c0_17 = arith.constant 0 : index
    %21 = vector.load %arg7[%c0_15, %c0_16, %c0_17] : memref<1x1x128xf32, #tpu.memory_space<vmem>>, vector<1x1x128xf32>
    tpu.vector_store %arg7[%c0_15, %c0_16, %c0_17], %20 {strides = array<i32>} : memref<1x1x128xf32, #tpu.memory_space<vmem>>, vector<1x1x128xf32>,
    return
  }
  func.func @transform_0(%arg0: i32) -> (i32, i32) {
    %c0_i32 = arith.constant 0 : i32
    %c0_i32_0 = arith.constant 0 : i32
    return %arg0, %c0_i32 : i32, i32
  }
  func.func @transform_1(%arg0: i32) -> (i32, i32) {
    %c0_i32 = arith.constant 0 : i32
    %c0_i32_0 = arith.constant 0 : i32
    %c0_i32_1 = arith.constant 0 : i32
    return %c0_i32, %c0_i32_0 : i32, i32
  }
  func.func @transform_2(%arg0: i32) -> (i32, i32) {
    %c0_i32 = arith.constant 0 : i32
    %c0_i32_0 = arith.constant 0 : i32
    %c0_i32_1 = arith.constant 0 : i32
    return %c0_i32, %c0_i32_0 : i32, i32
  }
  func.func @transform_3(%arg0: i32) -> (i32, i32) {
    %c0_i32 = arith.constant 0 : i32
    %c0_i32_0 = arith.constant 0 : i32
    %c0_i32_1 = arith.constant 0 : i32
    return %c0_i32, %c0_i32_0 : i32, i32
  }
  func.func @transform_4(%arg0: i32) -> (i32, i32) {
    %c0_i32 = arith.constant 0 : i32
    %c0_i32_0 = arith.constant 0 : i32
    return %arg0, %c0_i32 : i32, i32
  }
  func.func @transform_5(%arg0: i32) -> (i32, i32, i32) {
    %c0_i32 = arith.constant 0 : i32
    %c0_i32_0 = arith.constant 0 : i32
    %c0_i32_1 = arith.constant 0 : i32
    return %arg0, %c0_i32, %c0_i32_0 : i32, i32, i32
  }
  func.func @transform_6(%arg0: i32) -> (i32, i32, i32) {
    %c0_i32 = arith.constant 0 : i32
    %c0_i32_0 = arith.constant 0 : i32
    %c0_i32_1 = arith.constant 0 : i32
    return %arg0, %c0_i32, %c0_i32_0 : i32, i32, i32
  }
}

module attributes {stable_mosaic.version = 11 : i64} {
  func.func @bn_relu_max_kernel(%arg0: i32, %arg1: memref<16x8x128xf32, #tpu.memory_space<vmem>>, %arg2: memref<1x128xf32, #tpu.memory_space<vmem>>, %arg3: memref<1x128xf32, #tpu.memory_space<vmem>>, %arg4: memref<16x128xf32, #tpu.memory_space<vmem>>) attributes {dimension_semantics = [#tpu.dimension_semantics<parallel>], iteration_bounds = array<i64: 1>, scalar_prefetch = 0 : i64, scratch_operands = 0 : i64, tpu.core_type = #tpu.core_type<tc>, window_params = [{transform_indices = @transform_0, window_bounds = array<i64: 16, 8, 128>}, {pipeline_mode = #tpu.pipeline_mode<synchronous>, transform_indices = @transform_1, window_bounds = array<i64: 1, 128>}, {pipeline_mode = #tpu.pipeline_mode<synchronous>, transform_indices = @transform_2, window_bounds = array<i64: 1, 128>}, {transform_indices = @transform_3, window_bounds = array<i64: 16, 128>}]} {
    %c0 = arith.constant 0 : index
    %c0_0 = arith.constant 0 : index
    %c0_1 = arith.constant 0 : index
    %0 = vector.load %arg1[%c0, %c0_0, %c0_1] : memref<16x8x128xf32, #tpu.memory_space<vmem>>, vector<16x8x128xf32>
    %c0_2 = arith.constant 0 : index
    %c0_3 = arith.constant 0 : index
    %1 = vector.load %arg2[%c0_2, %c0_3] : memref<1x128xf32, #tpu.memory_space<vmem>>, vector<1x128xf32>
    %2 = vector.shape_cast %1 : vector<1x128xf32> to vector<1x1x128xf32>
    %3 = vector.broadcast %2 : vector<1x1x128xf32> to vector<16x8x128xf32>
    %4 = arith.mulf %0, %3 : vector<16x8x128xf32>
    %c0_4 = arith.constant 0 : index
    %c0_5 = arith.constant 0 : index
    %5 = vector.load %arg3[%c0_4, %c0_5] : memref<1x128xf32, #tpu.memory_space<vmem>>, vector<1x128xf32>
    %6 = vector.shape_cast %5 : vector<1x128xf32> to vector<1x1x128xf32>
    %7 = vector.broadcast %6 : vector<1x1x128xf32> to vector<16x8x128xf32>
    %8 = arith.addf %4, %7 : vector<16x8x128xf32>
    %cst = arith.constant 0.000000e+00 : f32
    %9 = vector.broadcast %cst : f32 to vector<16x8x128xf32>
    %10 = arith.maximumf %8, %9 : vector<16x8x128xf32>
    %cst_6 = arith.constant dense<0xFF800000> : vector<16x128xf32>
    %11 = vector.multi_reduction <maximumf>, %10, %cst_6 [1] : vector<16x8x128xf32> to vector<16x128xf32>
    %c0_7 = arith.constant 0 : index
    %c0_8 = arith.constant 0 : index
    %12 = vector.load %arg4[%c0_7, %c0_8] : memref<16x128xf32, #tpu.memory_space<vmem>>, vector<16x128xf32>
    tpu.vector_store %arg4[%c0_7, %c0_8], %11 {strides = array<i32>} : memref<16x128xf32, #tpu.memory_space<vmem>>, vector<16x128xf32>,
    return
  }
  func.func @transform_0(%arg0: i32) -> (i32, i32, i32) {
    %c0_i32 = arith.constant 0 : i32
    %c0_i32_0 = arith.constant 0 : i32
    %c0_i32_1 = arith.constant 0 : i32
    return %arg0, %c0_i32, %c0_i32_0 : i32, i32, i32
  }
  func.func @transform_1(%arg0: i32) -> (i32, i32) {
    %c0_i32 = arith.constant 0 : i32
    %c0_i32_0 = arith.constant 0 : i32
    %c0_i32_1 = arith.constant 0 : i32
    return %c0_i32, %c0_i32_0 : i32, i32
  }
  func.func @transform_2(%arg0: i32) -> (i32, i32) {
    %c0_i32 = arith.constant 0 : i32
    %c0_i32_0 = arith.constant 0 : i32
    %c0_i32_1 = arith.constant 0 : i32
    return %c0_i32, %c0_i32_0 : i32, i32
  }
  func.func @transform_3(%arg0: i32) -> (i32, i32) {
    %c0_i32 = arith.constant 0 : i32
    %c0_i32_0 = arith.constant 0 : i32
    return %arg0, %c0_i32 : i32, i32
  }
}

</mosaic_0001>

<llo_original>
// kernel: custom-call.8
$region0: #{custom-call.8}
  %s0 = inlined_call_operand.vmem [shape: f32[2,32], index: 0, kind: output, shape index: {}]

// kernel: pointnet_set_abstraction.4
$region0: #{pointnet_set_abstraction.4}
  #allocation0 [shape = 'u32[]', space=smem, size = 0x4, offset = 0x4, fixed_abs, tag = 'smem constant byte address 0x4 - core index']
  #allocation1 [shape = 'u32[144,128]{1,0:T(1,128)}', space=vmem, size = 0x12000, scoped, tag = 'internal scratch']
  %s0 = inlined_call_operand.vmem [shape: bf16[128,8], index: 0, kind: input, shape index: {}]
  %s1 = inlined_call_operand.vmem [shape: f32[1,8], index: 1, kind: input, shape index: {}]
  %s2 = inlined_call_operand.vmem [shape: f32[1,8], index: 2, kind: input, shape index: {}]
  %s3 = inlined_call_operand.vmem [shape: bf16[8,128], index: 3, kind: input, shape index: {}]
  %s4 = inlined_call_operand.vmem [shape: f32[128,128], index: 4, kind: output, shape index: {0}]
  %s5 = inlined_call_operand.vmem [shape: f32[1,1,128], index: 5, kind: output, shape index: {1}]
  %s6 = inlined_call_operand.vmem [shape: f32[1,1,128], index: 6, kind: output, shape index: {2}]
  %7 = xla_tuple %s4, %s5, %s6
  %s8 = sld [smem:[#allocation0]]
  $region42: #{pointnet_set_abstraction.4} parent=0
    _
  %s10 = ssub.s32 1, %s8
  %s11 = scalar_select 0, %s10, %s8
  // Predicated region
  $region2: #{pointnet_set_abstraction.4} parent=0 // pred_check
    _
  $region3: #{pointnet_set_abstraction.4} parent=0 // pred_check_branch
    %13 = sbr.rel (0) target = $region5
  $region4: #{pointnet_set_abstraction.4} parent=0 // pred_region
    _
  $region5: #{pointnet_set_abstraction.4} parent=0 // pred_fallthru
    _
  // Predicated region
  $region6: #{pointnet_set_abstraction.4} parent=0 // pred_check
    _
  $region7: #{pointnet_set_abstraction.4} parent=0 // pred_check_branch
    %15 = sbr.rel (0) target = $region9
  $region8: #{pointnet_set_abstraction.4} parent=0 // pred_region
    _
  $region9: #{pointnet_set_abstraction.4} parent=0 // pred_fallthru
    _
  // Predicated region
  $region10: #{pointnet_set_abstraction.4} parent=0 // pred_check
    _
  $region11: #{pointnet_set_abstraction.4} parent=0 // pred_check_branch
    %17 = sbr.rel (0) target = $region13
  $region12: #{pointnet_set_abstraction.4} parent=0 // pred_region
    _
  $region13: #{pointnet_set_abstraction.4} parent=0 // pred_fallthru
    _
  // Predicated region
  $region14: #{pointnet_set_abstraction.4} parent=0 // pred_check
    _
  $region15: #{pointnet_set_abstraction.4} parent=0 // pred_check_branch
    %19 = sbr.rel (0) target = $region17
  $region16: #{pointnet_set_abstraction.4} parent=0 // pred_region
    _
  $region17: #{pointnet_set_abstraction.4} parent=0 // pred_fallthru
    _
  %v21 = vld [vmem:[%s0] sm:$0xf]
  %v22 = vld [vmem:[%s0 + $0x4] sm:$0xf]
  %v23 = vld [vmem:[%s0 + $0x8] sm:$0xf]
  %v24 = vld [vmem:[%s0 + $0xc] sm:$0xf]
  %v25 = vld [vmem:[%s0 + $0x10] sm:$0xf]
  %v26 = vld [vmem:[%s0 + $0x14] sm:$0xf]
  %v27 = vld [vmem:[%s0 + $0x18] sm:$0xf]
  %v28 = vld [vmem:[%s0 + $0x1c] sm:$0xf]
  %v29 = vld [vmem:[%s0 + $0x20] sm:$0xf]
  %v30 = vld [vmem:[%s0 + $0x24] sm:$0xf]
  %v31 = vld [vmem:[%s0 + $0x28] sm:$0xf]
  %v32 = vld [vmem:[%s0 + $0x2c] sm:$0xf]
  %v33 = vld [vmem:[%s0 + $0x30] sm:$0xf]
  %v34 = vld [vmem:[%s0 + $0x34] sm:$0xf]
  %v35 = vld [vmem:[%s0 + $0x38] sm:$0xf]
  %v36 = vld [vmem:[%s0 + $0x3c] sm:$0xf]
  %v37 = vld [vmem:[%s3] sm:$0xf]
  %v54 = vunpack.c.l.b16 %v21
  %v55 = vunpack.c.l.b16 %v22
  %v56 = vunpack.c.l.b16 %v23
  %v57 = vunpack.c.l.b16 %v24
  %v58 = vunpack.c.l.b16 %v25
  %v59 = vunpack.c.l.b16 %v26
  %v60 = vunpack.c.l.b16 %v27
  %v61 = vunpack.c.l.b16 %v28
  %v62 = vunpack.c.l.b16 %v29
  %v63 = vunpack.c.l.b16 %v30
  %v64 = vunpack.c.l.b16 %v31
  %v65 = vunpack.c.l.b16 %v32
  %v66 = vunpack.c.l.b16 %v33
  %v67 = vunpack.c.l.b16 %v34
  %v68 = vunpack.c.l.b16 %v35
  %v69 = vunpack.c.l.b16 %v36
  %v70 = vpack.c.b16 %v55, %v54
  %v71 = vpack.c.b16 %v57, %v56
  %v72 = vpack.c.b16 %v59, %v58
  %v73 = vpack.c.b16 %v61, %v60
  %v74 = vpack.c.b16 %v63, %v62
  %v75 = vpack.c.b16 %v65, %v64
  %v76 = vpack.c.b16 %v67, %v66
  %v77 = vpack.c.b16 %v69, %v68
  %vm78 = vcmask 64512
  %v80 = vsel %vm78, %v70, 0
  %v83 = vsel %vm78, %v71, 0
  %v86 = vsel %vm78, %v72, 0
  %v89 = vsel %vm78, %v73, 0
  %v92 = vsel %vm78, %v74, 0
  %v95 = vsel %vm78, %v75, 0
  %v98 = vsel %vm78, %v76, 0
  %v101 = vsel %vm78, %v77, 0
  %vm103 = vcmask 1043456
  %v105 = vsel %vm103, %v37, 0
  %107 = vmatprep.subr.bf16.mxu0 0
  %108 = vmatpush1.bf16.msra.mxu0 0
  %109 = vmatprep.subr.bf16.mxu0 0
  %110 = vmatpush1.bf16.msra.mxu0 0
  %111 = vmatprep.subr.bf16.mxu0 0
  %112 = vmatpush1.bf16.msra.mxu0 0
  %113 = vmatprep.subr.bf16.mxu0 0
  %114 = vmatpush1.bf16.msra.mxu0 0
  %115 = vmatprep.subr.bf16.mxu0 0
  %116 = vmatpush1.bf16.msra.mxu0 0
  %117 = vmatprep.subr.bf16.mxu0 0
  %118 = vmatpush1.bf16.msra.mxu0 0
  %119 = vmatprep.subr.bf16.mxu0 0
  %120 = vmatpush1.bf16.msra.mxu0 0
  %121 = vmatprep.subr.bf16.mxu0 0
  %122 = vmatpush1.bf16.msra.mxu0 %v105
  %123 = vmatprep.subr.bf16.mxu0 0
  %124 = vmatpush2.bf16.msra.mxu0 0
  %125 = vmatprep.subr.bf16.mxu0 0
  %126 = vmatpush2.bf16.msra.mxu0 0
  %127 = vmatprep.subr.bf16.mxu0 0
  %128 = vmatpush2.bf16.msra.mxu0 0
  %129 = vmatprep.subr.bf16.mxu0 0
  %130 = vmatpush2.bf16.msra.mxu0 0
  %131 = vmatprep.subr.bf16.mxu0 0
  %132 = vmatpush2.bf16.msra.mxu0 0
  %133 = vmatprep.subr.bf16.mxu0 0
  %134 = vmatpush2.bf16.msra.mxu0 0
  %135 = vmatprep.subr.bf16.mxu0 0
  %136 = vmatpush2.bf16.msra.mxu0 0
  %137 = vmatprep.subr.bf16.mxu0 0
  %138 = vmatpush2.bf16.msra.mxu0 0
  %139 = vmatprep.mubr.bf16.mxu0 0
  %140 = vmatmul.mubr.bf16.gmra.mxu0 %v80
  %v141 = vpop.f32.mrf.mxu0
  %v142 = vadd.f32 0.0, %v141
  %v143 = vpop.f32.mrf.mxu0
  %v144 = vpop.f32.mrf.mxu0
  %v145 = vadd.f32 0.0, %v144
  %v146 = vpop.f32.mrf.mxu0
  %147 = vmatprep.mubr.bf16.mxu0 0
  %148 = vmatmul.mubr.bf16.gmra.mxu0 %v83
  %v149 = vpop.f32.mrf.mxu0
  %v150 = vadd.f32 0.0, %v149
  %v151 = vpop.f32.mrf.mxu0
  %v152 = vpop.f32.mrf.mxu0
  %v153 = vadd.f32 0.0, %v152
  %v154 = vpop.f32.mrf.mxu0
  %155 = vmatprep.mubr.bf16.mxu0 0
  %156 = vmatmul.mubr.bf16.gmra.mxu0 %v86
  %v157 = vpop.f32.mrf.mxu0
  %v158 = vadd.f32 0.0, %v157
  %v159 = vpop.f32.mrf.mxu0
  %v160 = vpop.f32.mrf.mxu0
  %v161 = vadd.f32 0.0, %v160
  %v162 = vpop.f32.mrf.mxu0
  %163 = vmatprep.mubr.bf16.mxu0 0
  %164 = vmatmul.mubr.bf16.gmra.mxu0 %v89
  %v165 = vpop.f32.mrf.mxu0
  %v166 = vadd.f32 0.0, %v165
  %v167 = vpop.f32.mrf.mxu0
  %v168 = vpop.f32.mrf.mxu0
  %v169 = vadd.f32 0.0, %v168
  %v170 = vpop.f32.mrf.mxu0
  %171 = vmatprep.mubr.bf16.mxu0 0
  %172 = vmatmul.mubr.bf16.gmra.mxu0 %v92
  %v173 = vpop.f32.mrf.mxu0
  %v174 = vadd.f32 0.0, %v173
  %v175 = vpop.f32.mrf.mxu0
  %v176 = vpop.f32.mrf.mxu0
  %v177 = vadd.f32 0.0, %v176
  %v178 = vpop.f32.mrf.mxu0
  %179 = vmatprep.mubr.bf16.mxu0 0
  %180 = vmatmul.mubr.bf16.gmra.mxu0 %v95
  %v181 = vpop.f32.mrf.mxu0
  %v182 = vadd.f32 0.0, %v181
  %v183 = vpop.f32.mrf.mxu0
  %v184 = vpop.f32.mrf.mxu0
  %v185 = vadd.f32 0.0, %v184
  %v186 = vpop.f32.mrf.mxu0
  %187 = vmatprep.mubr.bf16.mxu0 0
  %188 = vmatmul.mubr.bf16.gmra.mxu0 %v98
  %v189 = vpop.f32.mrf.mxu0
  %v190 = vadd.f32 0.0, %v189
  %v191 = vpop.f32.mrf.mxu0
  %v192 = vpop.f32.mrf.mxu0
  %v193 = vadd.f32 0.0, %v192
  %v194 = vpop.f32.mrf.mxu0
  %195 = vmatprep.mubr.bf16.mxu0 0
  %196 = vmatmul.mubr.bf16.gmra.mxu0 %v101
  %v197 = vpop.f32.mrf.mxu0
  %v198 = vadd.f32 0.0, %v197
  %v199 = vpop.f32.mrf.mxu0
  %v200 = vpop.f32.mrf.mxu0
  %v201 = vadd.f32 0.0, %v200
  %v202 = vpop.f32.mrf.mxu0
  %203 = vdwg.mxu0
  %204 = vst [vmem:[%s4] sm:$0xff] %v142
  %205 = vst [vmem:[%s4 + $0x8] sm:$0xff] %v145
  %206 = vst [vmem:[%s4 + $0x10] sm:$0xff] %v150
  %207 = vst [vmem:[%s4 + $0x18] sm:$0xff] %v153
  %208 = vst [vmem:[%s4 + $0x20] sm:$0xff] %v158
  %209 = vst [vmem:[%s4 + $0x28] sm:$0xff] %v161
  %210 = vst [vmem:[%s4 + $0x30] sm:$0xff] %v166
  %211 = vst [vmem:[%s4 + $0x38] sm:$0xff] %v169
  %212 = vst [vmem:[%s4 + $0x40] sm:$0xff] %v174
  %213 = vst [vmem:[%s4 + $0x48] sm:$0xff] %v177
  %214 = vst [vmem:[%s4 + $0x50] sm:$0xff] %v182
  %215 = vst [vmem:[%s4 + $0x58] sm:$0xff] %v185
  %216 = vst [vmem:[%s4 + $0x60] sm:$0xff] %v190
  %217 = vst [vmem:[%s4 + $0x68] sm:$0xff] %v193
  %218 = vst [vmem:[%s4 + $0x70] sm:$0xff] %v198
  %219 = vst [vmem:[%s4 + $0x78] sm:$0xff] %v201
  %v220 = vadd.f32 %v142, %v145
  %v221 = vadd.f32 %v220, %v150
  %v222 = vadd.f32 %v221, %v153
  %v223 = vadd.f32 %v222, %v158
  %v224 = vadd.f32 %v223, %v161
  %v225 = vadd.f32 %v224, %v166
  %v226 = vadd.f32 %v225, %v169
  %v227 = vadd.f32 %v226, %v174
  %v228 = vadd.f32 %v227, %v177
  %v229 = vadd.f32 %v228, %v182
  %v230 = vadd.f32 %v229, %v185
  %v231 = vadd.f32 %v230, %v190
  %v232 = vadd.f32 %v231, %v193
  %v233 = vadd.f32 %v232, %v198
  %v234 = vadd.f32 %v233, %v201
  %v235 = vrot.slane %v234, 4
  %v236 = vadd.f32 %v234, %v235
  %v237 = vrot.slane %v236, 2
  %v238 = vadd.f32 %v236, %v237
  %v239 = vrot.slane %v238, 1
  %v240 = vadd.f32 %v238, %v239
  %241 = vst [vmem:[%s5] sm:$0x1] %v240
  %v242 = vmul.f32 %v142, %v142
  %v243 = vmul.f32 %v145, %v145
  %v244 = vmul.f32 %v150, %v150
  %v245 = vmul.f32 %v153, %v153
  %v246 = vmul.f32 %v158, %v158
  %v247 = vmul.f32 %v161, %v161
  %v248 = vmul.f32 %v166, %v166
  %v249 = vmul.f32 %v169, %v169
  %v250 = vmul.f32 %v174, %v174
  %v251 = vmul.f32 %v177, %v177
  %v252 = vmul.f32 %v182, %v182
  %v253 = vmul.f32 %v185, %v185
  %v254 = vmul.f32 %v190, %v190
  %v255 = vmul.f32 %v193, %v193
  %v256 = vmul.f32 %v198, %v198
  %v257 = vmul.f32 %v201, %v201
  %v258 = vadd.f32 %v242, %v243
  %v259 = vadd.f32 %v258, %v244
  %v260 = vadd.f32 %v259, %v245
  %v261 = vadd.f32 %v260, %v246
  %v262 = vadd.f32 %v261, %v247
  %v263 = vadd.f32 %v262, %v248
  %v264 = vadd.f32 %v263, %v249
  %v265 = vadd.f32 %v264, %v250
  %v266 = vadd.f32 %v265, %v251
  %v267 = vadd.f32 %v266, %v252
  %v268 = vadd.f32 %v267, %v253
  %v269 = vadd.f32 %v268, %v254
  %v270 = vadd.f32 %v269, %v255
  %v271 = vadd.f32 %v270, %v256
  %v272 = vadd.f32 %v271, %v257
  %v273 = vrot.slane %v272, 4
  %v274 = vadd.f32 %v272, %v273
  %v275 = vrot.slane %v274, 2
  %v276 = vadd.f32 %v274, %v275
  %v277 = vrot.slane %v276, 1
  %v278 = vadd.f32 %v276, %v277
  %279 = vst [vmem:[%s6] sm:$0x1] %v278
  // Predicated region
  $region18: #{pointnet_set_abstraction.4} parent=0 // pred_check
    _
  $region19: #{pointnet_set_abstraction.4} parent=0 // pred_check_branch
    %281 = sbr.rel (0) target = $region21
  $region20: #{pointnet_set_abstraction.4} parent=0 // pred_region
    _
  $region21: #{pointnet_set_abstraction.4} parent=0 // pred_fallthru
    _
  // Predicated region
  $region22: #{pointnet_set_abstraction.4} parent=0 // pred_check
    _
  $region23: #{pointnet_set_abstraction.4} parent=0 // pred_check_branch
    %283 = sbr.rel (0) target = $region25
  $region24: #{pointnet_set_abstraction.4} parent=0 // pred_region
    _
  $region25: #{pointnet_set_abstraction.4} parent=0 // pred_fallthru
    _
  // Predicated region
  $region26: #{pointnet_set_abstraction.4} parent=0 // pred_check
    _
  $region27: #{pointnet_set_abstraction.4} parent=0 // pred_check_branch
    %285 = sbr.rel (0) target = $region29
  $region28: #{pointnet_set_abstraction.4} parent=0 // pred_region
    _
  $region29: #{pointnet_set_abstraction.4} parent=0 // pred_fallthru
    _
  // Predicated region
  $region30: #{pointnet_set_abstraction.4} parent=0 // pred_check
    _
  $region31: #{pointnet_set_abstraction.4} parent=0 // pred_check_branch
    %287 = sbr.rel (0) target = $region33
  $region32: #{pointnet_set_abstraction.4} parent=0 // pred_region
    _
  $region33: #{pointnet_set_abstraction.4} parent=0 // pred_fallthru
    _
  // Predicated region
  $region34: #{pointnet_set_abstraction.4} parent=0 // pred_check
    _
  $region35: #{pointnet_set_abstraction.4} parent=0 // pred_check_branch
    %289 = sbr.rel (0) target = $region37
  $region36: #{pointnet_set_abstraction.4} parent=0 // pred_region
    _
  $region37: #{pointnet_set_abstraction.4} parent=0 // pred_fallthru
    _
  // Predicated region
  $region38: #{pointnet_set_abstraction.4} parent=0 // pred_check
    _
  $region39: #{pointnet_set_abstraction.4} parent=0 // pred_check_branch
    %291 = sbr.rel (0) target = $region41
  $region40: #{pointnet_set_abstraction.4} parent=0 // pred_region
    _
  $region41: #{pointnet_set_abstraction.4} parent=0 // pred_fallthru
    _

// kernel: pointnet_set_abstraction.5
$region0: #{pointnet_set_abstraction.5}
  #allocation0 [shape = 'u32[]', space=smem, size = 0x4, offset = 0x4, fixed_abs, tag = 'smem constant byte address 0x4 - core index']
  #allocation1 [shape = 'u32[144,128]{1,0:T(1,128)}', space=vmem, size = 0x12000, scoped, tag = 'internal scratch']
  %s0 = inlined_call_operand.vmem [shape: f32[128,128], index: 0, kind: input, shape index: {}]
  %s1 = inlined_call_operand.vmem [shape: f32[1,128], index: 1, kind: input, shape index: {}]
  %s2 = inlined_call_operand.vmem [shape: f32[1,128], index: 2, kind: input, shape index: {}]
  %s3 = inlined_call_operand.vmem [shape: bf16[128,128], index: 3, kind: input, shape index: {}]
  %s4 = inlined_call_operand.vmem [shape: f32[128,128], index: 4, kind: output, shape index: {0}]
  %s5 = inlined_call_operand.vmem [shape: f32[1,1,128], index: 5, kind: output, shape index: {1}]
  %s6 = inlined_call_operand.vmem [shape: f32[1,1,128], index: 6, kind: output, shape index: {2}]
  %7 = xla_tuple %s4, %s5, %s6
  %s8 = sld [smem:[#allocation0]]
  $region42: #{pointnet_set_abstraction.5} parent=0
    _
  %s10 = ssub.s32 1, %s8
  %s11 = scalar_select 0, %s10, %s8
  // Predicated region
  $region2: #{pointnet_set_abstraction.5} parent=0 // pred_check
    _
  $region3: #{pointnet_set_abstraction.5} parent=0 // pred_check_branch
    %13 = sbr.rel (0) target = $region5
  $region4: #{pointnet_set_abstraction.5} parent=0 // pred_region
    _
  $region5: #{pointnet_set_abstraction.5} parent=0 // pred_fallthru
    _
  // Predicated region
  $region6: #{pointnet_set_abstraction.5} parent=0 // pred_check
    _
  $region7: #{pointnet_set_abstraction.5} parent=0 // pred_check_branch
    %15 = sbr.rel (0) target = $region9
  $region8: #{pointnet_set_abstraction.5} parent=0 // pred_region
    _
  $region9: #{pointnet_set_abstraction.5} parent=0 // pred_fallthru
    _
  // Predicated region
  $region10: #{pointnet_set_abstraction.5} parent=0 // pred_check
    _
  $region11: #{pointnet_set_abstraction.5} parent=0 // pred_check_branch
    %17 = sbr.rel (0) target = $region13
  $region12: #{pointnet_set_abstraction.5} parent=0 // pred_region
    _
  $region13: #{pointnet_set_abstraction.5} parent=0 // pred_fallthru
    _
  // Predicated region
  $region14: #{pointnet_set_abstraction.5} parent=0 // pred_check
    _
  $region15: #{pointnet_set_abstraction.5} parent=0 // pred_check_branch
    %19 = sbr.rel (0) target = $region17
  $region16: #{pointnet_set_abstraction.5} parent=0 // pred_region
    _
  $region17: #{pointnet_set_abstraction.5} parent=0 // pred_fallthru
    _
  %v21 = vld [vmem:[%s0] sm:$0xff]
  %v22 = vld [vmem:[%s0 + $0x8] sm:$0xff]
  %v23 = vld [vmem:[%s0 + $0x10] sm:$0xff]
  %v24 = vld [vmem:[%s0 + $0x18] sm:$0xff]
  %v25 = vld [vmem:[%s0 + $0x20] sm:$0xff]
  %v26 = vld [vmem:[%s0 + $0x28] sm:$0xff]
  %v27 = vld [vmem:[%s0 + $0x30] sm:$0xff]
  %v28 = vld [vmem:[%s0 + $0x38] sm:$0xff]
  %v29 = vld [vmem:[%s0 + $0x40] sm:$0xff]
  %v30 = vld [vmem:[%s0 + $0x48] sm:$0xff]
  %v31 = vld [vmem:[%s0 + $0x50] sm:$0xff]
  %v32 = vld [vmem:[%s0 + $0x58] sm:$0xff]
  %v33 = vld [vmem:[%s0 + $0x60] sm:$0xff]
  %v34 = vld [vmem:[%s0 + $0x68] sm:$0xff]
  %v35 = vld [vmem:[%s0 + $0x70] sm:$0xff]
  %v36 = vld [vmem:[%s0 + $0x78] sm:$0xff]
  %v37 = vld [vmem:[%s1] sm:$0x1]
  %v39 = vlaneseq
  %v40 = vshrl.u32 %v39, 7
  %v41 = vsub.s32 0, %v40
  %v42 = vrot.slane %v37, %v41
  %v44 = vmul.f32 %v21, %v42
  %v45 = vmul.f32 %v22, %v42
  %v46 = vmul.f32 %v23, %v42
  %v47 = vmul.f32 %v24, %v42
  %v48 = vmul.f32 %v25, %v42
  %v49 = vmul.f32 %v26, %v42
  %v50 = vmul.f32 %v27, %v42
  %v51 = vmul.f32 %v28, %v42
  %v52 = vmul.f32 %v29, %v42
  %v53 = vmul.f32 %v30, %v42
  %v54 = vmul.f32 %v31, %v42
  %v55 = vmul.f32 %v32, %v42
  %v56 = vmul.f32 %v33, %v42
  %v57 = vmul.f32 %v34, %v42
  %v58 = vmul.f32 %v35, %v42
  %v59 = vmul.f32 %v36, %v42
  %v60 = vld [vmem:[%s2] sm:$0x1]
  %v62 = vlaneseq
  %v63 = vshrl.u32 %v62, 7
  %v64 = vsub.s32 0, %v63
  %v65 = vrot.slane %v60, %v64
  %v67 = vadd.f32 %v44, %v65
  %v68 = vadd.f32 %v45, %v65
  %v69 = vadd.f32 %v46, %v65
  %v70 = vadd.f32 %v47, %v65
  %v71 = vadd.f32 %v48, %v65
  %v72 = vadd.f32 %v49, %v65
  %v73 = vadd.f32 %v50, %v65
  %v74 = vadd.f32 %v51, %v65
  %v75 = vadd.f32 %v52, %v65
  %v76 = vadd.f32 %v53, %v65
  %v77 = vadd.f32 %v54, %v65
  %v78 = vadd.f32 %v55, %v65
  %v79 = vadd.f32 %v56, %v65
  %v80 = vadd.f32 %v57, %v65
  %v81 = vadd.f32 %v58, %v65
  %v82 = vadd.f32 %v59, %v65
  %v83 = vmax.f32 %v67, 0.0
  %v84 = vmax.f32 %v68, 0.0
  %v85 = vmax.f32 %v69, 0.0
  %v86 = vmax.f32 %v70, 0.0
  %v87 = vmax.f32 %v71, 0.0
  %v88 = vmax.f32 %v72, 0.0
  %v89 = vmax.f32 %v73, 0.0
  %v90 = vmax.f32 %v74, 0.0
  %v91 = vmax.f32 %v75, 0.0
  %v92 = vmax.f32 %v76, 0.0
  %v93 = vmax.f32 %v77, 0.0
  %v94 = vmax.f32 %v78, 0.0
  %v95 = vmax.f32 %v79, 0.0
  %v96 = vmax.f32 %v80, 0.0
  %v97 = vmax.f32 %v81, 0.0
  %v98 = vmax.f32 %v82, 0.0
  %v99 = vpack.c.bf16 %v84, %v83
  %v100 = vpack.c.bf16 %v86, %v85
  %v101 = vpack.c.bf16 %v88, %v87
  %v102 = vpack.c.bf16 %v90, %v89
  %v103 = vpack.c.bf16 %v92, %v91
  %v104 = vpack.c.bf16 %v94, %v93
  %v105 = vpack.c.bf16 %v96, %v95
  %v106 = vpack.c.bf16 %v98, %v97
  %v107 = vld [vmem:[%s3] sm:$0xf]
  %v108 = vld [vmem:[%s3 + $0x4] sm:$0xf]
  %v109 = vld [vmem:[%s3 + $0x8] sm:$0xf]
  %v110 = vld [vmem:[%s3 + $0xc] sm:$0xf]
  %v111 = vld [vmem:[%s3 + $0x10] sm:$0xf]
  %v112 = vld [vmem:[%s3 + $0x14] sm:$0xf]
  %v113 = vld [vmem:[%s3 + $0x18] sm:$0xf]
  %v114 = vld [vmem:[%s3 + $0x1c] sm:$0xf]
  %v115 = vld [vmem:[%s3 + $0x20] sm:$0xf]
  %v116 = vld [vmem:[%s3 + $0x24] sm:$0xf]
  %v117 = vld [vmem:[%s3 + $0x28] sm:$0xf]
  %v118 = vld [vmem:[%s3 + $0x2c] sm:$0xf]
  %v119 = vld [vmem:[%s3 + $0x30] sm:$0xf]
  %v120 = vld [vmem:[%s3 + $0x34] sm:$0xf]
  %v121 = vld [vmem:[%s3 + $0x38] sm:$0xf]
  %v122 = vld [vmem:[%s3 + $0x3c] sm:$0xf]
  %v139 = vunpack.c.l.b16 %v107
  %v140 = vunpack.c.l.b16 %v108
  %v141 = vunpack.c.l.b16 %v109
  %v142 = vunpack.c.l.b16 %v110
  %v143 = vunpack.c.l.b16 %v111
  %v144 = vunpack.c.l.b16 %v112
  %v145 = vunpack.c.l.b16 %v113
  %v146 = vunpack.c.l.b16 %v114
  %v147 = vunpack.c.l.b16 %v115
  %v148 = vunpack.c.l.b16 %v116
  %v149 = vunpack.c.l.b16 %v117
  %v150 = vunpack.c.l.b16 %v118
  %v151 = vunpack.c.l.b16 %v119
  %v152 = vunpack.c.l.b16 %v120
  %v153 = vunpack.c.l.b16 %v121
  %v154 = vunpack.c.l.b16 %v122
  %v155 = vpack.c.b16 %v140, %v139
  %v156 = vpack.c.b16 %v142, %v141
  %v157 = vpack.c.b16 %v144, %v143
  %v158 = vpack.c.b16 %v146, %v145
  %v159 = vpack.c.b16 %v148, %v147
  %v160 = vpack.c.b16 %v150, %v149
  %v161 = vpack.c.b16 %v152, %v151
  %v162 = vpack.c.b16 %v154, %v153
  %171 = vmatprep.subr.bf16.mxu0 0
  %172 = vmatpush1.bf16.msra.mxu0 %v162
  %173 = vmatprep.subr.bf16.mxu0 0
  %174 = vmatpush1.bf16.msra.mxu0 %v161
  %175 = vmatprep.subr.bf16.mxu0 0
  %176 = vmatpush1.bf16.msra.mxu0 %v160
  %177 = vmatprep.subr.bf16.mxu0 0
  %178 = vmatpush1.bf16.msra.mxu0 %v159
  %179 = vmatprep.subr.bf16.mxu0 0
  %180 = vmatpush1.bf16.msra.mxu0 %v158
  %181 = vmatprep.subr.bf16.mxu0 0
  %182 = vmatpush1.bf16.msra.mxu0 %v157
  %183 = vmatprep.subr.bf16.mxu0 0
  %184 = vmatpush1.bf16.msra.mxu0 %v156
  %185 = vmatprep.subr.bf16.mxu0 0
  %186 = vmatpush1.bf16.msra.mxu0 %v155
  %187 = vmatprep.subr.bf16.mxu0 0
  %188 = vmatpush2.bf16.msra.mxu0 0
  %189 = vmatprep.subr.bf16.mxu0 0
  %190 = vmatpush2.bf16.msra.mxu0 0
  %191 = vmatprep.subr.bf16.mxu0 0
  %192 = vmatpush2.bf16.msra.mxu0 0
  %193 = vmatprep.subr.bf16.mxu0 0
  %194 = vmatpush2.bf16.msra.mxu0 0
  %195 = vmatprep.subr.bf16.mxu0 0
  %196 = vmatpush2.bf16.msra.mxu0 0
  %197 = vmatprep.subr.bf16.mxu0 0
  %198 = vmatpush2.bf16.msra.mxu0 0
  %199 = vmatprep.subr.bf16.mxu0 0
  %200 = vmatpush2.bf16.msra.mxu0 0
  %201 = vmatprep.subr.bf16.mxu0 0
  %202 = vmatpush2.bf16.msra.mxu0 0
  %203 = vmatprep.mubr.bf16.mxu0 0
  %204 = vmatmul.mubr.bf16.gmra.mxu0 %v99
  %v205 = vpop.f32.mrf.mxu0
  %v206 = vadd.f32 0.0, %v205
  %v207 = vpop.f32.mrf.mxu0
  %v208 = vpop.f32.mrf.mxu0
  %v209 = vadd.f32 0.0, %v208
  %v210 = vpop.f32.mrf.mxu0
  %211 = vmatprep.mubr.bf16.mxu0 0
  %212 = vmatmul.mubr.bf16.gmra.mxu0 %v100
  %v213 = vpop.f32.mrf.mxu0
  %v214 = vadd.f32 0.0, %v213
  %v215 = vpop.f32.mrf.mxu0
  %v216 = vpop.f32.mrf.mxu0
  %v217 = vadd.f32 0.0, %v216
  %v218 = vpop.f32.mrf.mxu0
  %219 = vmatprep.mubr.bf16.mxu0 0
  %220 = vmatmul.mubr.bf16.gmra.mxu0 %v101
  %v221 = vpop.f32.mrf.mxu0
  %v222 = vadd.f32 0.0, %v221
  %v223 = vpop.f32.mrf.mxu0
  %v224 = vpop.f32.mrf.mxu0
  %v225 = vadd.f32 0.0, %v224
  %v226 = vpop.f32.mrf.mxu0
  %227 = vmatprep.mubr.bf16.mxu0 0
  %228 = vmatmul.mubr.bf16.gmra.mxu0 %v102
  %v229 = vpop.f32.mrf.mxu0
  %v230 = vadd.f32 0.0, %v229
  %v231 = vpop.f32.mrf.mxu0
  %v232 = vpop.f32.mrf.mxu0
  %v233 = vadd.f32 0.0, %v232
  %v234 = vpop.f32.mrf.mxu0
  %235 = vmatprep.mubr.bf16.mxu0 0
  %236 = vmatmul.mubr.bf16.gmra.mxu0 %v103
  %v237 = vpop.f32.mrf.mxu0
  %v238 = vadd.f32 0.0, %v237
  %v239 = vpop.f32.mrf.mxu0
  %v240 = vpop.f32.mrf.mxu0
  %v241 = vadd.f32 0.0, %v240
  %v242 = vpop.f32.mrf.mxu0
  %243 = vmatprep.mubr.bf16.mxu0 0
  %244 = vmatmul.mubr.bf16.gmra.mxu0 %v104
  %v245 = vpop.f32.mrf.mxu0
  %v246 = vadd.f32 0.0, %v245
  %v247 = vpop.f32.mrf.mxu0
  %v248 = vpop.f32.mrf.mxu0
  %v249 = vadd.f32 0.0, %v248
  %v250 = vpop.f32.mrf.mxu0
  %251 = vmatprep.mubr.bf16.mxu0 0
  %252 = vmatmul.mubr.bf16.gmra.mxu0 %v105
  %v253 = vpop.f32.mrf.mxu0
  %v254 = vadd.f32 0.0, %v253
  %v255 = vpop.f32.mrf.mxu0
  %v256 = vpop.f32.mrf.mxu0
  %v257 = vadd.f32 0.0, %v256
  %v258 = vpop.f32.mrf.mxu0
  %259 = vmatprep.mubr.bf16.mxu0 0
  %260 = vmatmul.mubr.bf16.gmra.mxu0 %v106
  %v261 = vpop.f32.mrf.mxu0
  %v262 = vadd.f32 0.0, %v261
  %v263 = vpop.f32.mrf.mxu0
  %v264 = vpop.f32.mrf.mxu0
  %v265 = vadd.f32 0.0, %v264
  %v266 = vpop.f32.mrf.mxu0
  %267 = vdwg.mxu0
  %268 = vst [vmem:[%s4] sm:$0xff] %v206
  %269 = vst [vmem:[%s4 + $0x8] sm:$0xff] %v209
  %270 = vst [vmem:[%s4 + $0x10] sm:$0xff] %v214
  %271 = vst [vmem:[%s4 + $0x18] sm:$0xff] %v217
  %272 = vst [vmem:[%s4 + $0x20] sm:$0xff] %v222
  %273 = vst [vmem:[%s4 + $0x28] sm:$0xff] %v225
  %274 = vst [vmem:[%s4 + $0x30] sm:$0xff] %v230
  %275 = vst [vmem:[%s4 + $0x38] sm:$0xff] %v233
  %276 = vst [vmem:[%s4 + $0x40] sm:$0xff] %v238
  %277 = vst [vmem:[%s4 + $0x48] sm:$0xff] %v241
  %278 = vst [vmem:[%s4 + $0x50] sm:$0xff] %v246
  %279 = vst [vmem:[%s4 + $0x58] sm:$0xff] %v249
  %280 = vst [vmem:[%s4 + $0x60] sm:$0xff] %v254
  %281 = vst [vmem:[%s4 + $0x68] sm:$0xff] %v257
  %282 = vst [vmem:[%s4 + $0x70] sm:$0xff] %v262
  %283 = vst [vmem:[%s4 + $0x78] sm:$0xff] %v265
  %v284 = vadd.f32 %v206, %v209
  %v285 = vadd.f32 %v284, %v214
  %v286 = vadd.f32 %v285, %v217
  %v287 = vadd.f32 %v286, %v222
  %v288 = vadd.f32 %v287, %v225
  %v289 = vadd.f32 %v288, %v230
  %v290 = vadd.f32 %v289, %v233
  %v291 = vadd.f32 %v290, %v238
  %v292 = vadd.f32 %v291, %v241
  %v293 = vadd.f32 %v292, %v246
  %v294 = vadd.f32 %v293, %v249
  %v295 = vadd.f32 %v294, %v254
  %v296 = vadd.f32 %v295, %v257
  %v297 = vadd.f32 %v296, %v262
  %v298 = vadd.f32 %v297, %v265
  %v299 = vrot.slane %v298, 4
  %v300 = vadd.f32 %v298, %v299
  %v301 = vrot.slane %v300, 2
  %v302 = vadd.f32 %v300, %v301
  %v303 = vrot.slane %v302, 1
  %v304 = vadd.f32 %v302, %v303
  %305 = vst [vmem:[%s5] sm:$0x1] %v304
  %v306 = vmul.f32 %v206, %v206
  %v307 = vmul.f32 %v209, %v209
  %v308 = vmul.f32 %v214, %v214
  %v309 = vmul.f32 %v217, %v217
  %v310 = vmul.f32 %v222, %v222
  %v311 = vmul.f32 %v225, %v225
  %v312 = vmul.f32 %v230, %v230
  %v313 = vmul.f32 %v233, %v233
  %v314 = vmul.f32 %v238, %v238
  %v315 = vmul.f32 %v241, %v241
  %v316 = vmul.f32 %v246, %v246
  %v317 = vmul.f32 %v249, %v249
  %v318 = vmul.f32 %v254, %v254
  %v319 = vmul.f32 %v257, %v257
  %v320 = vmul.f32 %v262, %v262
  %v321 = vmul.f32 %v265, %v265
  %v322 = vadd.f32 %v306, %v307
  %v323 = vadd.f32 %v322, %v308
  %v324 = vadd.f32 %v323, %v309
  %v325 = vadd.f32 %v324, %v310
  %v326 = vadd.f32 %v325, %v311
  %v327 = vadd.f32 %v326, %v312
  %v328 = vadd.f32 %v327, %v313
  %v329 = vadd.f32 %v328, %v314
  %v330 = vadd.f32 %v329, %v315
  %v331 = vadd.f32 %v330, %v316
  %v332 = vadd.f32 %v331, %v317
  %v333 = vadd.f32 %v332, %v318
  %v334 = vadd.f32 %v333, %v319
  %v335 = vadd.f32 %v334, %v320
  %v336 = vadd.f32 %v335, %v321
  %v337 = vrot.slane %v336, 4
  %v338 = vadd.f32 %v336, %v337
  %v339 = vrot.slane %v338, 2
  %v340 = vadd.f32 %v338, %v339
  %v341 = vrot.slane %v340, 1
  %v342 = vadd.f32 %v340, %v341
  %343 = vst [vmem:[%s6] sm:$0x1] %v342
  // Predicated region
  $region18: #{pointnet_set_abstraction.5} parent=0 // pred_check
    _
  $region19: #{pointnet_set_abstraction.5} parent=0 // pred_check_branch
    %345 = sbr.rel (0) target = $region21
  $region20: #{pointnet_set_abstraction.5} parent=0 // pred_region
    _
  $region21: #{pointnet_set_abstraction.5} parent=0 // pred_fallthru
    _
  // Predicated region
  $region22: #{pointnet_set_abstraction.5} parent=0 // pred_check
    _
  $region23: #{pointnet_set_abstraction.5} parent=0 // pred_check_branch
    %347 = sbr.rel (0) target = $region25
  $region24: #{pointnet_set_abstraction.5} parent=0 // pred_region
    _
  $region25: #{pointnet_set_abstraction.5} parent=0 // pred_fallthru
    _
  // Predicated region
  $region26: #{pointnet_set_abstraction.5} parent=0 // pred_check
    _
  $region27: #{pointnet_set_abstraction.5} parent=0 // pred_check_branch
    %349 = sbr.rel (0) target = $region29
  $region28: #{pointnet_set_abstraction.5} parent=0 // pred_region
    _
  $region29: #{pointnet_set_abstraction.5} parent=0 // pred_fallthru
    _
  // Predicated region
  $region30: #{pointnet_set_abstraction.5} parent=0 // pred_check
    _
  $region31: #{pointnet_set_abstraction.5} parent=0 // pred_check_branch
    %351 = sbr.rel (0) target = $region33
  $region32: #{pointnet_set_abstraction.5} parent=0 // pred_region
    _
  $region33: #{pointnet_set_abstraction.5} parent=0 // pred_fallthru
    _
  // Predicated region
  $region34: #{pointnet_set_abstraction.5} parent=0 // pred_check
    _
  $region35: #{pointnet_set_abstraction.5} parent=0 // pred_check_branch
    %353 = sbr.rel (0) target = $region37
  $region36: #{pointnet_set_abstraction.5} parent=0 // pred_region
    _
  $region37: #{pointnet_set_abstraction.5} parent=0 // pred_fallthru
    _
  // Predicated region
  $region38: #{pointnet_set_abstraction.5} parent=0 // pred_check
    _
  $region39: #{pointnet_set_abstraction.5} parent=0 // pred_check_branch
    %355 = sbr.rel (0) target = $region41
  $region40: #{pointnet_set_abstraction.5} parent=0 // pred_region
    _
  $region41: #{pointnet_set_abstraction.5} parent=0 // pred_fallthru
    _

// kernel: pointnet_set_abstraction.7
$region0: #{pointnet_set_abstraction.7}
  #allocation0 [shape = 'u32[]', space=smem, size = 0x4, offset = 0x4, fixed_abs, tag = 'smem constant byte address 0x4 - core index']
  #allocation1 [shape = 'u32[144,128]{1,0:T(1,128)}', space=vmem, size = 0x12000, scoped, tag = 'internal scratch']
  %s0 = inlined_call_operand.vmem [shape: f32[16,8,128], index: 0, kind: input, shape index: {}]
  %s1 = inlined_call_operand.vmem [shape: f32[1,128], index: 1, kind: input, shape index: {}]
  %s2 = inlined_call_operand.vmem [shape: f32[1,128], index: 2, kind: input, shape index: {}]
  %s3 = inlined_call_operand.vmem [shape: f32[16,128], index: 3, kind: output, shape index: {}]
  %s4 = sld [smem:[#allocation0]]
  $region22: #{pointnet_set_abstraction.7} parent=0
    _
  %s6 = ssub.s32 1, %s4
  %s7 = scalar_select 0, %s6, %s4
  // Predicated region
  $region2: #{pointnet_set_abstraction.7} parent=0 // pred_check
    _
  $region3: #{pointnet_set_abstraction.7} parent=0 // pred_check_branch
    %9 = sbr.rel (0) target = $region5
  $region4: #{pointnet_set_abstraction.7} parent=0 // pred_region
    _
  $region5: #{pointnet_set_abstraction.7} parent=0 // pred_fallthru
    _
  // Predicated region
  $region6: #{pointnet_set_abstraction.7} parent=0 // pred_check
    _
  $region7: #{pointnet_set_abstraction.7} parent=0 // pred_check_branch
    %11 = sbr.rel (0) target = $region9
  $region8: #{pointnet_set_abstraction.7} parent=0 // pred_region
    _
  $region9: #{pointnet_set_abstraction.7} parent=0 // pred_fallthru
    _
  // Predicated region
  $region10: #{pointnet_set_abstraction.7} parent=0 // pred_check
    _
  $region11: #{pointnet_set_abstraction.7} parent=0 // pred_check_branch
    %13 = sbr.rel (0) target = $region13
  $region12: #{pointnet_set_abstraction.7} parent=0 // pred_region
    _
  $region13: #{pointnet_set_abstraction.7} parent=0 // pred_fallthru
    _
  %v14 = vld [vmem:[%s0] sm:$0xff]
  %v15 = vld [vmem:[%s0 + $0x8] sm:$0xff]
  %v16 = vld [vmem:[%s0 + $0x10] sm:$0xff]
  %v17 = vld [vmem:[%s0 + $0x18] sm:$0xff]
  %v18 = vld [vmem:[%s0 + $0x20] sm:$0xff]
  %v19 = vld [vmem:[%s0 + $0x28] sm:$0xff]
  %v20 = vld [vmem:[%s0 + $0x30] sm:$0xff]
  %v21 = vld [vmem:[%s0 + $0x38] sm:$0xff]
  %v22 = vld [vmem:[%s0 + $0x40] sm:$0xff]
  %v23 = vld [vmem:[%s0 + $0x48] sm:$0xff]
  %v24 = vld [vmem:[%s0 + $0x50] sm:$0xff]
  %v25 = vld [vmem:[%s0 + $0x58] sm:$0xff]
  %v26 = vld [vmem:[%s0 + $0x60] sm:$0xff]
  %v27 = vld [vmem:[%s0 + $0x68] sm:$0xff]
  %v28 = vld [vmem:[%s0 + $0x70] sm:$0xff]
  %v29 = vld [vmem:[%s0 + $0x78] sm:$0xff]
  %v30 = vld [vmem:[%s1] sm:$0x1]
  %v32 = vlaneseq
  %v33 = vshrl.u32 %v32, 7
  %v34 = vsub.s32 0, %v33
  %v35 = vrot.slane %v30, %v34
  %v37 = vmul.f32 %v14, %v35
  %v38 = vmul.f32 %v15, %v35
  %v39 = vmul.f32 %v16, %v35
  %v40 = vmul.f32 %v17, %v35
  %v41 = vmul.f32 %v18, %v35
  %v42 = vmul.f32 %v19, %v35
  %v43 = vmul.f32 %v20, %v35
  %v44 = vmul.f32 %v21, %v35
  %v45 = vmul.f32 %v22, %v35
  %v46 = vmul.f32 %v23, %v35
  %v47 = vmul.f32 %v24, %v35
  %v48 = vmul.f32 %v25, %v35
  %v49 = vmul.f32 %v26, %v35
  %v50 = vmul.f32 %v27, %v35
  %v51 = vmul.f32 %v28, %v35
  %v52 = vmul.f32 %v29, %v35
  %v53 = vld [vmem:[%s2] sm:$0x1]
  %v55 = vlaneseq
  %v56 = vshrl.u32 %v55, 7
  %v57 = vsub.s32 0, %v56
  %v58 = vrot.slane %v53, %v57
  %v60 = vadd.f32 %v37, %v58
  %v61 = vadd.f32 %v38, %v58
  %v62 = vadd.f32 %v39, %v58
  %v63 = vadd.f32 %v40, %v58
  %v64 = vadd.f32 %v41, %v58
  %v65 = vadd.f32 %v42, %v58
  %v66 = vadd.f32 %v43, %v58
  %v67 = vadd.f32 %v44, %v58
  %v68 = vadd.f32 %v45, %v58
  %v69 = vadd.f32 %v46, %v58
  %v70 = vadd.f32 %v47, %v58
  %v71 = vadd.f32 %v48, %v58
  %v72 = vadd.f32 %v49, %v58
  %v73 = vadd.f32 %v50, %v58
  %v74 = vadd.f32 %v51, %v58
  %v75 = vadd.f32 %v52, %v58
  %v76 = vmax.f32 %v60, 0.0
  %v77 = vmax.f32 %v61, 0.0
  %v78 = vmax.f32 %v62, 0.0
  %v79 = vmax.f32 %v63, 0.0
  %v80 = vmax.f32 %v64, 0.0
  %v81 = vmax.f32 %v65, 0.0
  %v82 = vmax.f32 %v66, 0.0
  %v83 = vmax.f32 %v67, 0.0
  %v84 = vmax.f32 %v68, 0.0
  %v85 = vmax.f32 %v69, 0.0
  %v86 = vmax.f32 %v70, 0.0
  %v87 = vmax.f32 %v71, 0.0
  %v88 = vmax.f32 %v72, 0.0
  %v89 = vmax.f32 %v73, 0.0
  %v90 = vmax.f32 %v74, 0.0
  %v91 = vmax.f32 %v75, 0.0
  %v92 = vrot.slane %v76, 4
  %v93 = vmax.f32 %v76, %v92
  %v94 = vrot.slane %v93, 2
  %v95 = vmax.f32 %v93, %v94
  %v96 = vrot.slane %v95, 1
  %v97 = vmax.f32 %v95, %v96
  %v98 = vrot.slane %v77, 4
  %v99 = vmax.f32 %v77, %v98
  %v100 = vrot.slane %v99, 2
  %v101 = vmax.f32 %v99, %v100
  %v102 = vrot.slane %v101, 1
  %v103 = vmax.f32 %v101, %v102
  %v104 = vrot.slane %v78, 4
  %v105 = vmax.f32 %v78, %v104
  %v106 = vrot.slane %v105, 2
  %v107 = vmax.f32 %v105, %v106
  %v108 = vrot.slane %v107, 1
  %v109 = vmax.f32 %v107, %v108
  %v110 = vrot.slane %v79, 4
  %v111 = vmax.f32 %v79, %v110
  %v112 = vrot.slane %v111, 2
  %v113 = vmax.f32 %v111, %v112
  %v114 = vrot.slane %v113, 1
  %v115 = vmax.f32 %v113, %v114
  %v116 = vrot.slane %v80, 4
  %v117 = vmax.f32 %v80, %v116
  %v118 = vrot.slane %v117, 2
  %v119 = vmax.f32 %v117, %v118
  %v120 = vrot.slane %v119, 1
  %v121 = vmax.f32 %v119, %v120
  %v122 = vrot.slane %v81, 4
  %v123 = vmax.f32 %v81, %v122
  %v124 = vrot.slane %v123, 2
  %v125 = vmax.f32 %v123, %v124
  %v126 = vrot.slane %v125, 1
  %v127 = vmax.f32 %v125, %v126
  %v128 = vrot.slane %v82, 4
  %v129 = vmax.f32 %v82, %v128
  %v130 = vrot.slane %v129, 2
  %v131 = vmax.f32 %v129, %v130
  %v132 = vrot.slane %v131, 1
  %v133 = vmax.f32 %v131, %v132
  %v134 = vrot.slane %v83, 4
  %v135 = vmax.f32 %v83, %v134
  %v136 = vrot.slane %v135, 2
  %v137 = vmax.f32 %v135, %v136
  %v138 = vrot.slane %v137, 1
  %v139 = vmax.f32 %v137, %v138
  %v140 = vrot.slane %v84, 4
  %v141 = vmax.f32 %v84, %v140
  %v142 = vrot.slane %v141, 2
  %v143 = vmax.f32 %v141, %v142
  %v144 = vrot.slane %v143, 1
  %v145 = vmax.f32 %v143, %v144
  %v146 = vrot.slane %v85, 4
  %v147 = vmax.f32 %v85, %v146
  %v148 = vrot.slane %v147, 2
  %v149 = vmax.f32 %v147, %v148
  %v150 = vrot.slane %v149, 1
  %v151 = vmax.f32 %v149, %v150
  %v152 = vrot.slane %v86, 4
  %v153 = vmax.f32 %v86, %v152
  %v154 = vrot.slane %v153, 2
  %v155 = vmax.f32 %v153, %v154
  %v156 = vrot.slane %v155, 1
  %v157 = vmax.f32 %v155, %v156
  %v158 = vrot.slane %v87, 4
  %v159 = vmax.f32 %v87, %v158
  %v160 = vrot.slane %v159, 2
  %v161 = vmax.f32 %v159, %v160
  %v162 = vrot.slane %v161, 1
  %v163 = vmax.f32 %v161, %v162
  %v164 = vrot.slane %v88, 4
  %v165 = vmax.f32 %v88, %v164
  %v166 = vrot.slane %v165, 2
  %v167 = vmax.f32 %v165, %v166
  %v168 = vrot.slane %v167, 1
  %v169 = vmax.f32 %v167, %v168
  %v170 = vrot.slane %v89, 4
  %v171 = vmax.f32 %v89, %v170
  %v172 = vrot.slane %v171, 2
  %v173 = vmax.f32 %v171, %v172
  %v174 = vrot.slane %v173, 1
  %v175 = vmax.f32 %v173, %v174
  %v176 = vrot.slane %v90, 4
  %v177 = vmax.f32 %v90, %v176
  %v178 = vrot.slane %v177, 2
  %v179 = vmax.f32 %v177, %v178
  %v180 = vrot.slane %v179, 1
  %v181 = vmax.f32 %v179, %v180
  %v182 = vrot.slane %v91, 4
  %v183 = vmax.f32 %v91, %v182
  %v184 = vrot.slane %v183, 2
  %v185 = vmax.f32 %v183, %v184
  %v186 = vrot.slane %v185, 1
  %v187 = vmax.f32 %v185, %v186
  %vm204 = vcmask 1041409
  %v205 = vsel %vm204, %v103, %v97
  %vm206 = vcmask 1042434
  %v207 = vsel %vm206, %v109, %v205
  %vm208 = vcmask 1043459
  %v209 = vsel %vm208, %v115, %v207
  %vm210 = vcmask 1044484
  %v211 = vsel %vm210, %v121, %v209
  %vm212 = vcmask 1045509
  %v213 = vsel %vm212, %v127, %v211
  %vm214 = vcmask 1046534
  %v215 = vsel %vm214, %v133, %v213
  %vm216 = vcmask 1047559
  %v217 = vsel %vm216, %v139, %v215
  %v218 = vsel %vm204, %v151, %v145
  %v219 = vsel %vm206, %v157, %v218
  %v220 = vsel %vm208, %v163, %v219
  %v221 = vsel %vm210, %v169, %v220
  %v222 = vsel %vm212, %v175, %v221
  %v223 = vsel %vm214, %v181, %v222
  %v224 = vsel %vm216, %v187, %v223
  %227 = vst [vmem:[%s3] sm:$0xff] %v217
  %228 = vst [vmem:[%s3 + $0x8] sm:$0xff] %v224
  // Predicated region
  $region14: #{pointnet_set_abstraction.7} parent=0 // pred_check
    _
  $region15: #{pointnet_set_abstraction.7} parent=0 // pred_check_branch
    %230 = sbr.rel (0) target = $region17
  $region16: #{pointnet_set_abstraction.7} parent=0 // pred_region
    _
  $region17: #{pointnet_set_abstraction.7} parent=0 // pred_fallthru
    _
  // Predicated region
  $region18: #{pointnet_set_abstraction.7} parent=0 // pred_check
    _
  $region19: #{pointnet_set_abstraction.7} parent=0 // pred_check_branch
    %232 = sbr.rel (0) target = $region21
  $region20: #{pointnet_set_abstraction.7} parent=0 // pred_region
    _
  $region21: #{pointnet_set_abstraction.7} parent=0 // pred_fallthru
    _

</llo_original>
